<compile_context>
chip_gen: v7x
topology: tpu7x:2x2x1
jax: 0.10.0
libtpu: 0.0.40
codegen_flags: <defaults>
</compile_context>

<pallas_src>
import functools

import jax
import jax.numpy as jnp
from jax import lax
from jax.experimental import pallas as pl
from jax.experimental.pallas import tpu as pltpu

_LANE = 128
_MAX_TILE_S = 32768
_TARGET_BLOCK_BYTES = 4 << 20   # ~4 MiB padded input blocks (review: 4-8 MiB)


# ---------------------------------------------------------------------------
# Chip heuristics (defensive; any failure falls back to the conservative path)
# ---------------------------------------------------------------------------
def _device_kind():
    try:
        return (getattr(jax.devices()[0], "device_kind", "") or "").lower()
    except Exception:
        return ""


def _has_two_tensorcores(kind):
    # v4 / v5p megacore and v7x expose 2 TensorCores that "parallel" grid axes
    # can shard across; v5e / v6e are single-TC.  Unknown -> assume 1 (safe).
    return any(t in kind for t in ("v7", "v4", "v5p"))


def _has_bf16_vpu(kind):
    # v6e / v7x have a bf16 VPU path; v5e and older do not.  Unknown -> False.
    if not kind:
        return False
    return not any(t in kind for t in ("v2", "v3", "v4", "v5"))


# ---------------------------------------------------------------------------
# Kernel
# ---------------------------------------------------------------------------
def _attention_pool_kernel(x_ref, o_ref, m_sc, l_sc, acc_sc, *,
                           att_idx, spatial_size, tile_s, needs_mask, mul_dtype):
    """Online-softmax attention pooling over spatial tiles.

    x_ref : (TB, C, TS)  block of the (B, C, S)-flattened feature map
    o_ref : (1, TB, C)   normalized weighted sums (all C channels)
    m_sc  : (TB, 1) f32  running spatial max of the attention row
    l_sc  : (TB, 1) f32  running softmax denominator
    acc_sc: (TB, C) f32  running (unnormalized) weighted channel sums
    """
    k = pl.program_id(1)
    last = pl.num_programs(1) - 1

    @pl.when(k == 0)
    def _init():
        m_sc[...] = jnp.full_like(m_sc, -jnp.inf)
        l_sc[...] = jnp.zeros_like(l_sc)
        acc_sc[...] = jnp.zeros_like(acc_sc)

    x_raw = x_ref[...]                                    # (TB, C, TS)
    att_raw = x_raw[:, att_idx, :].astype(jnp.float32)    # (TB, TS) static slice
    x_mul = x_raw.astype(mul_dtype)                       # bf16 on v6e/v7x, else f32

    def step(x, att):
        # Online-softmax update + weighted channel accumulation for one tile.
        m_prev = m_sc[...]                                # (TB, 1)
        m_new = jnp.maximum(m_prev, jnp.max(att, axis=-1, keepdims=True))
        alpha = jnp.exp(m_prev - m_new)                   # (TB, 1)
        p = jnp.exp(att - m_new)                          # (TB, TS) unnormalized
        l_sc[...] = alpha * l_sc[...] + jnp.sum(p, axis=-1, keepdims=True)
        contrib = jnp.sum(
            (x * p.astype(x.dtype)[:, None, :]).astype(jnp.float32), axis=-1)
        acc_sc[...] = alpha * acc_sc[...] + contrib       # (TB, C)
        m_sc[...] = m_new

    if not needs_mask:
        # S is an exact multiple of the spatial tile: no masking anywhere.
        step(x_mul, att_raw)
    else:
        # Only the LAST spatial tile overhangs S: keep every other tile on the
        # cheap unmasked path (no iota / compare / select per element).
        @pl.when(k < last)
        def _body():
            step(x_mul, att_raw)

        @pl.when(k == last)
        def _tail():
            col = k * tile_s + lax.broadcasted_iota(jnp.int32, att_raw.shape, 1)
            valid = col < spatial_size
            att = jnp.where(valid, att_raw, -jnp.inf)
            x = jnp.where(valid[:, None, :], x_mul, 0.0).astype(mul_dtype)
            step(x, att)

    @pl.when(k == last)
    def _finish():
        # Deferred normalization: one (TB, C) divide instead of S lane divides.
        # (An all -inf attention row yields NaN, matching torch.softmax.)
        o_ref[...] = (acc_sc[...] / l_sc[...])[None].astype(o_ref.dtype)


# ---------------------------------------------------------------------------
# Tiling
# ---------------------------------------------------------------------------
def _pick_spatial_tile(spatial, c_pad, itemsize, target_bytes):
    # If the full spatial extent fits the block budget, take it in one step.
    if spatial * c_pad * itemsize <= target_bytes:
        return spatial
    max_ts = (target_bytes // (c_pad * itemsize)) // _LANE * _LANE
    max_ts = int(max(_LANE, min(max_ts, _MAX_TILE_S)))
    # Prefer a 128-multiple divisor of S (no overhanging tile, no mask path),
    # but never shrink the tile below half the budget just to avoid the mask.
    ts = max_ts
    while ts >= max(_LANE, max_ts // 2):
        if spatial % ts == 0:
            return ts
        ts -= _LANE
    return max_ts            # overhanging last tile, handled by the masked path


def _pick_tiles(batch, channels, spatial, itemsize, two_tc):
    # Sublane packing: 8 rows for 32-bit, 16 for 16-bit, 32 for 8-bit dtypes.
    pack = max(8, 32 // max(1, itemsize))
    c_pad = ((channels + pack - 1) // pack) * pack        # real padded C in VMEM
    ts = _pick_spatial_tile(spatial, c_pad, itemsize, _TARGET_BLOCK_BYTES)
    per_batch = c_pad * ts * itemsize
    tb = max(1, min(batch, _TARGET_BLOCK_BYTES // per_batch))
    if two_tc and batch >= 2:
        # Keep >=2 "parallel" batch grid steps only when there are 2 TCs.
        tb = min(tb, max(1, batch // 2))
    while batch % tb:
        tb -= 1
    block_bytes = tb * per_batch
    return tb, ts, block_bytes


# ---------------------------------------------------------------------------
# Wrapper
# ---------------------------------------------------------------------------
def attention_averaged_pooling_2d(feature_map, attention_channel_index):
    """JAX/Pallas equivalent of AttentionAveragedPooling2d.forward."""
    B, C, H, W = feature_map.shape
    S = H * W
    idx = attention_channel_index
    if idx < 0:
        idx += C
    assert 0 <= idx < C

    kind = _device_kind()
    itemsize = jnp.dtype(feature_map.dtype).itemsize
    tb, ts, block_bytes = _pick_tiles(B, C, S, itemsize, _has_two_tensorcores(kind))
    nb = B // tb
    nk = pl.cdiv(S, ts)
    needs_mask = (S % ts) != 0

    # bf16 inputs: run the dominant x*p multiply on the packed bf16 VPU path on
    # chips that have one; softmax and the accumulator remain f32.
    mul_dtype = jnp.float32
    if feature_map.dtype == jnp.bfloat16 and _has_bf16_vpu(kind):
        mul_dtype = jnp.bfloat16

    x = feature_map.reshape(B, C, S)       # view-style reshape, no data shuffle

    # Explicit scoped-VMEM budget: 2 pipeline buffers of the (padded) input
    # block + headroom for output/scratch/internal, clamped to [16, 32] MiB
    # (safe on v5e/v6e 128 MiB and v7x 64 MiB physical VMEM).
    vmem_limit = int(max(16 << 20, min(32 << 20, 2 * block_bytes + (8 << 20))))

    kernel = functools.partial(
        _attention_pool_kernel,
        att_idx=idx, spatial_size=S, tile_s=ts, needs_mask=needs_mask,
        mul_dtype=mul_dtype)

    sums = pl.pallas_call(
        kernel,
        out_shape=jax.ShapeDtypeStruct((nb, tb, C), feature_map.dtype),
        grid_spec=pltpu.PrefetchScalarGridSpec(
            num_scalar_prefetch=0,
            grid=(nb, nk),
            in_specs=[pl.BlockSpec((tb, C, ts), lambda b, k: (b, 0, k))],
            out_specs=pl.BlockSpec((1, tb, C), lambda b, k: (b, 0, 0)),
            scratch_shapes=[
                pltpu.VMEM((tb, 1), jnp.float32),   # running max
                pltpu.VMEM((tb, 1), jnp.float32),   # running denominator
                pltpu.VMEM((tb, C), jnp.float32),   # running weighted sums
            ]),
        compiler_params=pltpu.CompilerParams(
            dimension_semantics=("parallel", "arbitrary"),
            vmem_limit_bytes=vmem_limit),
    )(x)

    sums = sums.reshape(B, C)
    # Drop the attention channel from the tiny (B, C) result (static slices).
    sums = jnp.concatenate([sums[:, :idx], sums[:, idx + 1:]], axis=1)
    return sums.reshape(B, C - 1, 1, 1)


if __name__ == "__main__":
    key = jax.random.PRNGKey(0)
    B, C, H, W = 2, 4, 16, 16
    x = jax.random.normal(key, (B, C, H, W), dtype=jnp.float32)

    attention_channel_index = -1  # module __init__ argument

    out = attention_averaged_pooling_2d(x, attention_channel_index)
    out = jax.block_until_ready(out)

    # Pure-JAX reference (mirrors the PyTorch code path).
    i = attention_channel_index % C
    xr = x.reshape(B, C, -1)
    mask = jax.nn.softmax(xr[:, i, :], axis=-1)[:, None, :]
    feat = jnp.concatenate([xr[:, :i], xr[:, i + 1:]], axis=1)
    ref = jnp.sum(feat * mask, axis=-1)[:, :, None, None]

    assert out.shape == (B, C - 1, 1, 1), out.shape
    assert jnp.allclose(out, ref, atol=1e-5, rtol=1e-5), float(
        jnp.max(jnp.abs(out - ref)))
    print("KERNEL_OK")
</pallas_src>

<mosaic_0001>
module attributes {stable_mosaic.version = 11 : i64} {
  func.func @_attention_pool_kernel(%arg0: i32, %arg1: i32, %arg2: memref<2x4x256xf32, #tpu.memory_space<vmem>>, %arg3: memref<1x2x4xf32, #tpu.memory_space<vmem>>, %arg4: memref<2x1xf32, #tpu.memory_space<vmem>>, %arg5: memref<2x1xf32, #tpu.memory_space<vmem>>, %arg6: memref<2x4xf32, #tpu.memory_space<vmem>>) attributes {dimension_semantics = [#tpu.dimension_semantics<parallel>, #tpu.dimension_semantics<arbitrary>], iteration_bounds = array<i64: 1, 1>, scalar_prefetch = 0 : i64, scratch_operands = 3 : i64, tpu.core_type = #tpu.core_type<tc>, window_params = [{transform_indices = @transform_0, window_bounds = array<i64: 2, 4, 256>}, {transform_indices = @transform_1, window_bounds = array<i64: 1, 2, 4>}]} {
    %c0_i32 = arith.constant 0 : i32
    %0 = arith.cmpi eq, %arg1, %c0_i32 : i32
    %1 = arith.extui %0 : i1 to i32
    %c0_i32_0 = arith.constant 0 : i32
    %2 = arith.cmpi ne, %1, %c0_i32_0 : i32
    scf.if %2 {
      %cst_19 = arith.constant 0xFF800000 : f32
      %34 = vector.broadcast %cst_19 : f32 to vector<2x1xf32>
      %c0_20 = arith.constant 0 : index
      %c0_21 = arith.constant 0 : index
      %35 = vector.load %arg4[%c0_20, %c0_21] : memref<2x1xf32, #tpu.memory_space<vmem>>, vector<2x1xf32>
      tpu.vector_store %arg4[%c0_20, %c0_21], %34 {strides = array<i32>} : memref<2x1xf32, #tpu.memory_space<vmem>>, vector<2x1xf32>,
      %cst_22 = arith.constant 0.000000e+00 : f32
      %36 = vector.broadcast %cst_22 : f32 to vector<2x1xf32>
      %c0_23 = arith.constant 0 : index
      %c0_24 = arith.constant 0 : index
      %37 = vector.load %arg5[%c0_23, %c0_24] : memref<2x1xf32, #tpu.memory_space<vmem>>, vector<2x1xf32>
      tpu.vector_store %arg5[%c0_23, %c0_24], %36 {strides = array<i32>} : memref<2x1xf32, #tpu.memory_space<vmem>>, vector<2x1xf32>,
      %cst_25 = arith.constant 0.000000e+00 : f32
      %38 = vector.broadcast %cst_25 : f32 to vector<2x4xf32>
      %c0_26 = arith.constant 0 : index
      %c0_27 = arith.constant 0 : index
      %39 = vector.load %arg6[%c0_26, %c0_27] : memref<2x4xf32, #tpu.memory_space<vmem>>, vector<2x4xf32>
      tpu.vector_store %arg6[%c0_26, %c0_27], %38 {strides = array<i32>} : memref<2x4xf32, #tpu.memory_space<vmem>>, vector<2x4xf32>,
    } else {
    }
    %c0 = arith.constant 0 : index
    %c0_1 = arith.constant 0 : index
    %c0_2 = arith.constant 0 : index
    %3 = vector.load %arg2[%c0, %c0_1, %c0_2] : memref<2x4x256xf32, #tpu.memory_space<vmem>>, vector<2x4x256xf32>
    %4 = vector.extract_strided_slice %3 {offsets = [0, 3, 0], sizes = [2, 1, 256], strides = [1, 1, 1]} : vector<2x4x256xf32> to vector<2x1x256xf32>
    %5 = vector.shape_cast %4 : vector<2x1x256xf32> to vector<2x256xf32>
    %c0_3 = arith.constant 0 : index
    %c0_4 = arith.constant 0 : index
    %6 = vector.load %arg4[%c0_3, %c0_4] : memref<2x1xf32, #tpu.memory_space<vmem>>, vector<2x1xf32>
    %cst = arith.constant dense<0xFF800000> : vector<2xf32>
    %7 = vector.multi_reduction <maximumf>, %5, %cst [1] : vector<2x256xf32> to vector<2xf32>
    %8 = vector.shape_cast %7 : vector<2xf32> to vector<2x1xf32>
    %9 = arith.maximumf %6, %8 : vector<2x1xf32>
    %10 = arith.subf %6, %9 : vector<2x1xf32>
    %11 = math.exp %10 : vector<2x1xf32>
    %12 = vector.broadcast %9 : vector<2x1xf32> to vector<2x256xf32>
    %13 = arith.subf %5, %12 : vector<2x256xf32>
    %14 = math.exp %13 : vector<2x256xf32>
    %c0_5 = arith.constant 0 : index
    %c0_6 = arith.constant 0 : index
    %15 = vector.load %arg5[%c0_5, %c0_6] : memref<2x1xf32, #tpu.memory_space<vmem>>, vector<2x1xf32>
    %16 = arith.mulf %11, %15 : vector<2x1xf32>
    %cst_7 = arith.constant dense<0.000000e+00> : vector<2xf32>
    %17 = vector.multi_reduction <add>, %14, %cst_7 [1] : vector<2x256xf32> to vector<2xf32>
    %18 = vector.shape_cast %17 : vector<2xf32> to vector<2x1xf32>
    %19 = arith.addf %16, %18 : vector<2x1xf32>
    %c0_8 = arith.constant 0 : index
    %c0_9 = arith.constant 0 : index
    %20 = vector.load %arg5[%c0_8, %c0_9] : memref<2x1xf32, #tpu.memory_space<vmem>>, vector<2x1xf32>
    tpu.vector_store %arg5[%c0_8, %c0_9], %19 {strides = array<i32>} : memref<2x1xf32, #tpu.memory_space<vmem>>, vector<2x1xf32>,
    %21 = vector.shape_cast %14 : vector<2x256xf32> to vector<2x1x256xf32>
    %22 = vector.broadcast %21 : vector<2x1x256xf32> to vector<2x4x256xf32>
    %23 = arith.mulf %3, %22 : vector<2x4x256xf32>
    %cst_10 = arith.constant dense<0.000000e+00> : vector<2x4xf32>
    %24 = vector.multi_reduction <add>, %23, %cst_10 [2] : vector<2x4x256xf32> to vector<2x4xf32>
    %c0_11 = arith.constant 0 : index
    %c0_12 = arith.constant 0 : index
    %25 = vector.load %arg6[%c0_11, %c0_12] : memref<2x4xf32, #tpu.memory_space<vmem>>, vector<2x4xf32>
    %26 = vector.broadcast %11 : vector<2x1xf32> to vector<2x4xf32>
    %27 = arith.mulf %26, %25 : vector<2x4xf32>
    %28 = arith.addf %27, %24 : vector<2x4xf32>
    %c0_13 = arith.constant 0 : index
    %c0_14 = arith.constant 0 : index
    %29 = vector.load %arg6[%c0_13, %c0_14] : memref<2x4xf32, #tpu.memory_space<vmem>>, vector<2x4xf32>
    tpu.vector_store %arg6[%c0_13, %c0_14], %28 {strides = array<i32>} : memref<2x4xf32, #tpu.memory_space<vmem>>, vector<2x4xf32>,
    %c0_15 = arith.constant 0 : index
    %c0_16 = arith.constant 0 : index
    %30 = vector.load %arg4[%c0_15, %c0_16] : memref<2x1xf32, #tpu.memory_space<vmem>>, vector<2x1xf32>
    tpu.vector_store %arg4[%c0_15, %c0_16], %9 {strides = array<i32>} : memref<2x1xf32, #tpu.memory_space<vmem>>, vector<2x1xf32>,
    %c0_i32_17 = arith.constant 0 : i32
    %31 = arith.cmpi eq, %arg1, %c0_i32_17 : i32
    %32 = arith.extui %31 : i1 to i32
    %c0_i32_18 = arith.constant 0 : i32
    %33 = arith.cmpi ne, %32, %c0_i32_18 : i32
    scf.if %33 {
      %c0_19 = arith.constant 0 : index
      %c0_20 = arith.constant 0 : index
      %34 = vector.load %arg6[%c0_19, %c0_20] : memref<2x4xf32, #tpu.memory_space<vmem>>, vector<2x4xf32>
      %c0_21 = arith.constant 0 : index
      %c0_22 = arith.constant 0 : index
      %35 = vector.load %arg5[%c0_21, %c0_22] : memref<2x1xf32, #tpu.memory_space<vmem>>, vector<2x1xf32>
      %36 = vector.broadcast %35 : vector<2x1xf32> to vector<2x4xf32>
      %37 = arith.divf %34, %36 : vector<2x4xf32>
      %38 = vector.shape_cast %37 : vector<2x4xf32> to vector<1x2x4xf32>
      %c0_23 = arith.constant 0 : index
      %c0_24 = arith.constant 0 : index
      %c0_25 = arith.constant 0 : index
      %39 = vector.load %arg3[%c0_23, %c0_24, %c0_25] : memref<1x2x4xf32, #tpu.memory_space<vmem>>, vector<1x2x4xf32>
      tpu.vector_store %arg3[%c0_23, %c0_24, %c0_25], %38 {strides = array<i32>} : memref<1x2x4xf32, #tpu.memory_space<vmem>>, vector<1x2x4xf32>,
    } else {
    }
    return
  }
  func.func @transform_0(%arg0: i32, %arg1: i32) -> (i32, i32, i32) {
    %c0_i32 = arith.constant 0 : i32
    %c0_i32_0 = arith.constant 0 : i32
    return %arg0, %c0_i32, %arg1 : i32, i32, i32
  }
  func.func @transform_1(%arg0: i32, %arg1: i32) -> (i32, i32, i32) {
    %c0_i32 = arith.constant 0 : i32
    %c0_i32_0 = arith.constant 0 : i32
    %c0_i32_1 = arith.constant 0 : i32
    return %arg0, %c0_i32, %c0_i32_0 : i32, i32, i32
  }
}

</mosaic_0001>

<llo_original>
// kernel: tpu_custom_call.1
$region0: #{tpu_custom_call.1}
  #allocation0 [shape = 'u32[]', space=smem, size = 0x4, offset = 0x4, fixed_abs, tag = 'smem constant byte address 0x4 - core index']
  #allocation1 [shape = 'u32[144,128]{1,0:T(1,128)}', space=vmem, size = 0x12000, scoped, tag = 'internal scratch']
  #allocation2 [shape = 'f32[2,1]{1,0:T(2,128)}', space=vmem, size = 0x400, scoped, tag = 'scratch operand']
  #allocation3 [shape = 'f32[2,1]{1,0:T(2,128)}', space=vmem, size = 0x400, scoped, tag = 'scratch operand']
  #allocation4 [shape = 'f32[2,4]{1,0:T(2,128)}', space=vmem, size = 0x400, scoped, tag = 'scratch operand']
  %s0 = inlined_call_operand.hbm [shape: f32[2,4,256], index: 0, kind: input, shape index: {}]
  %s1 = inlined_call_operand.hbm [shape: f32[1,2,4], index: 1, kind: output, shape index: {}]
  %s2 = sld [smem:[#allocation0]]
  $region26: #{tpu_custom_call.1} parent=0
    _
  %s4 = ssub.s32 1, %s2
  %s5 = scalar_select 0, %s4, %s2
  $region1: #{tpu_custom_call.1} parent=0
    #allocation5 [shape = 'u8[8192]{0}', space=vmem, size = 0x2000, scoped, tag = 'input window, operand 0, single buffered']
    #allocation6 [shape = 's32[1]{0}', space=sflag, size = 0x4, scoped, tag = 'scoped memory for tpu_custom_call.1']
    #allocation7 [shape = 's32[1]{0}', space=sflag, size = 0x4, scoped, tag = 'scoped memory for tpu_custom_call.1']
    #allocation8 [shape = 'u8[1024]{0}', space=vmem, size = 0x400, scoped, tag = 'output window, operand 0, single buffered']
    %6 = vsyncpa [#allocation6], 0
    %7 = vsyncpa [#allocation7], 0
    // Predicated region
    $region2: #{tpu_custom_call.1} parent=1 // pred_check
      _
    $region3: #{tpu_custom_call.1} parent=1 // pred_check_branch
      %9 = sbr.rel (0) target = $region5
    $region4: #{tpu_custom_call.1} parent=1 // pred_region
      %s11 = ssub.s32 256, 256
      %12 = vsyncadd [#allocation6], %s11
      %s13 = sshll.u32 [#allocation5], 4
      %s14 = int_to_ptr.vmem [resolvable:$true] %s13
      %19 = dma.hbm_to_vmem [thread:$0]  %s0, 256, %s14, [#allocation6], 128, 128, 8
    $region5: #{tpu_custom_call.1} parent=1 // pred_fallthru
      _
    // Predicated region
    $region6: #{tpu_custom_call.1} parent=1 // pred_check
      _
    $region7: #{tpu_custom_call.1} parent=1 // pred_check_branch
      %21 = sbr.rel (0) target = $region9
    $region8: #{tpu_custom_call.1} parent=1 // pred_region
      %22 = dma.done [#allocation6], 256
    $region9: #{tpu_custom_call.1} parent=1 // pred_fallthru
      _
    %p23 = scmp.eq.s32.totalorder 0, 0
    // Predicated region
    $region10: #{tpu_custom_call.1} parent=1 // pred_check
      %p24 = pneg %p23
    $region11: #{tpu_custom_call.1} parent=1 // pred_check_branch
      %26 = sbr.rel (%p24) target = $region13
    $region12: #{tpu_custom_call.1} parent=1 // pred_region
      %vm27 = vcmask 1024
      %28 = vst.msk [vmem:[#allocation2] sm:$0x3] %vm27, -inf
      %29 = vst.msk [vmem:[#allocation3] sm:$0x3] %vm27, 0.0
      %vm30 = vcmask 25600
      %31 = vst.msk [vmem:[#allocation4] sm:$0x3] %vm30, 0.0
    $region13: #{tpu_custom_call.1} parent=1 // pred_fallthru
      _
    %v32 = vld [vmem:[#allocation5] sm:$0xff]
    %v33 = vld [vmem:[#allocation5 + $0x8] sm:$0xff]
    %v34 = vld [vmem:[#allocation2] sm:$0x3]
    %v37 = vlaneseq
    %v38 = vshrl.u32 %v37, 7
    %v39 = vsub.s32 3, %v38
    %v40 = vrot.slane %v32, %v39
    %v41 = vlaneseq
    %v42 = vshrl.u32 %v41, 7
    %v43 = vsub.s32 7, %v42
    %v44 = vrot.slane %v32, %v43
    %v45 = vlaneseq
    %v46 = vshrl.u32 %v45, 7
    %v47 = vsub.s32 3, %v46
    %v48 = vrot.slane %v33, %v47
    %v49 = vlaneseq
    %v50 = vshrl.u32 %v49, 7
    %v51 = vsub.s32 7, %v50
    %v52 = vrot.slane %v33, %v51
    %vm53 = vcmask 1044484
    %v54 = vsel %vm53, %v48, %v40
    %v55 = vsel %vm53, %v52, %v44
    %vm58 = vcmask 1044483
    %v59 = vsel %vm58, %v54, -inf
    %v60 = vsel %vm58, %v55, -inf
    %v61 = vmax.f32 %v59, %v60
    %62 = vmax.xlane.f32.xlu0 %v61
    %v63 = vpop.xlane.xlu0 %62
    %v65 = vrot.slane %v63, 3
    %v67 = vmax.f32 %v34, %v65
    %v68 = vsub.f32 %v34, %v67
    %v69 = vmul.f32 %v68, 1.442695
    %v70 = vpow.pop %v69
    %72 = vset.pattern.permute.xlu0 0
    %73 = vperm.xlu0 %72, %v67
    %v74 = vpop.permute.xlu0 %73
    %v76 = vunpack.c.l.s4 839922192
    %v77 = vunpack.c.0.s8 %v76
    %v78 = vlaneseq
    %v79 = vshrl.u32 %v78, 7
    %v80 = vsub.s32 %v77, %v79
    %v81 = vrot.slane %v74, %v80
    %v82 = vrot.slane %v81, 5
    %v83 = vrot.slane %v81, 6
    %v86 = vsub.f32 %v32, %v82
    %v87 = vsub.f32 %v33, %v83
    %v88 = vmul.f32 %v86, 1.442695
    %v89 = vpow.pop %v88
    %v90 = vmul.f32 %v87, 1.442695
    %v91 = vpow.pop %v90
    %v92 = vld [vmem:[#allocation3] sm:$0x3]
    %v93 = vmul.f32 %v70, %v92
    %v96 = vlaneseq
    %v97 = vshrl.u32 %v96, 7
    %v98 = vsub.s32 3, %v97
    %v99 = vrot.slane %v89, %v98
    %v100 = vlaneseq
    %v101 = vshrl.u32 %v100, 7
    %v102 = vsub.s32 7, %v101
    %v103 = vrot.slane %v89, %v102
    %v104 = vlaneseq
    %v105 = vshrl.u32 %v104, 7
    %v106 = vsub.s32 3, %v105
    %v107 = vrot.slane %v91, %v106
    %v108 = vlaneseq
    %v109 = vshrl.u32 %v108, 7
    %v110 = vsub.s32 7, %v109
    %v111 = vrot.slane %v91, %v110
    %v112 = vsel %vm53, %v107, %v99
    %v113 = vsel %vm53, %v111, %v103
    %v116 = vsel %vm58, %v112, 0.0
    %v117 = vsel %vm58, %v113, 0.0
    %v118 = vadd.f32 %v116, %v117
    %119 = vadd.xlane.f32.xlu0 %v118
    %v120 = vpop.xlane.xlu0 %119
    %v122 = vrot.slane %v120, 3
    %v124 = vadd.f32 %v93, %v122
    %vm125 = vcmask 1024
    %126 = vst.msk [vmem:[#allocation3] sm:$0x3] %vm125, %v124
    %v131 = vlaneseq
    %v132 = vshrl.u32 %v131, 7
    %v133 = vsub.s32 3, %v132
    %v134 = vrot.slane %v99, %v133
    %v135 = vlaneseq
    %v136 = vshrl.u32 %v135, 7
    %v137 = vsub.s32 3, %v136
    %v138 = vrot.slane %v103, %v137
    %v139 = vlaneseq
    %v140 = vshrl.u32 %v139, 7
    %v141 = vsub.s32 3, %v140
    %v142 = vrot.slane %v107, %v141
    %v143 = vlaneseq
    %v144 = vshrl.u32 %v143, 7
    %v145 = vsub.s32 3, %v144
    %v146 = vrot.slane %v111, %v145
    %v151 = vcombine.low %v134, %v138
    %v152 = vcombine.low %v142, %v146
    %v155 = vmul.f32 %v32, %v151
    %v156 = vmul.f32 %v33, %v152
    %v159 = vcombine.high %v155, %v155
    %v160 = vcombine.high %v156, %v156
    %vm163 = vcmask 1043456
    %v164 = vsel %vm163, %v155, 0.0
    %v165 = vsel %vm163, %v159, 0.0
    %v166 = vadd.f32 %v164, %v165
    %167 = vadd.xlane.f32.xlu0 %v166
    %v168 = vpop.xlane.xlu0 %167
    %v169 = vsel %vm163, %v156, 0.0
    %v170 = vsel %vm163, %v160, 0.0
    %v171 = vadd.f32 %v169, %v170
    %172 = vadd.xlane.f32.xlu0 %v171
    %v173 = vpop.xlane.xlu0 %172
    %v174 = vld [vmem:[#allocation4] sm:$0x3]
    %176 = vset.pattern.permute.xlu0 0
    %177 = vperm.xlu0 %176, %v70
    %v178 = vpop.permute.xlu0 %177
    %v180 = vmul.f32 %v178, %v174
    %v183 = vlaneseq
    %v184 = vand.u32 %v183, 127
    %v185 = vlaneseq
    %v186 = vshrl.u32 %v185, 7
    %v187 = vsub.s32 %v184, %v186
    %v188 = vrot.slane %v168, %v187
    %v189 = vlaneseq
    %v190 = vshrl.u32 %v189, 7
    %v191 = vsub.s32 %v184, %v190
    %v192 = vrot.slane %v173, %v191
    %vm193 = vcmask 1041409
    %v194 = vsel %vm193, %v192, %v188
    %v196 = vadd.f32 %v180, %v194
    %vm197 = vcmask 25600
    %198 = vst.msk [vmem:[#allocation4] sm:$0x3] %vm197, %v196
    %199 = vst.msk [vmem:[#allocation2] sm:$0x3] %vm125, %v67
    // Predicated region
    $region14: #{tpu_custom_call.1} parent=1 // pred_check
      %p200 = pneg %p23
    $region15: #{tpu_custom_call.1} parent=1 // pred_check_branch
      %202 = sbr.rel (%p200) target = $region17
    $region16: #{tpu_custom_call.1} parent=1 // pred_region
      %v203 = vld [vmem:[#allocation4] sm:$0x3]
      %v204 = vld [vmem:[#allocation3] sm:$0x3]
      %206 = vset.pattern.permute.xlu0 0
      %207 = vperm.xlu0 %206, %v204
      %v208 = vpop.permute.xlu0 %207
      %v210 = vrcp.pop %v208
      %v211 = vmul.f32 %v203, %v210
      %212 = vst.msk [vmem:[#allocation8] sm:$0x3] %vm197, %v211
    $region17: #{tpu_custom_call.1} parent=1 // pred_fallthru
      _
    // Predicated region
    $region18: #{tpu_custom_call.1} parent=1 // pred_check
      _
    $region19: #{tpu_custom_call.1} parent=1 // pred_check_branch
      %214 = sbr.rel (0) target = $region21
    $region20: #{tpu_custom_call.1} parent=1 // pred_region
      %s216 = ssub.s32 32, 32
      %217 = vsyncadd [#allocation7], %s216
      %s219 = sshll.u32 [#allocation8], 4
      %s220 = int_to_ptr.vmem [resolvable:$true] %s219
      %222 = dma.vmem_to_hbm [thread:$0]  %s220, 32, %s1, [#allocation7]
    $region21: #{tpu_custom_call.1} parent=1 // pred_fallthru
      _
    // Predicated region
    $region22: #{tpu_custom_call.1} parent=1 // pred_check
      _
    $region23: #{tpu_custom_call.1} parent=1 // pred_check_branch
      %224 = sbr.rel (0) target = $region25
    $region24: #{tpu_custom_call.1} parent=1 // pred_region
      %225 = dma.done [#allocation7], 32
    $region25: #{tpu_custom_call.1} parent=1 // pred_fallthru
      _
    %226 = vsyncpa [#allocation6], 1
    %227 = vsyncpa [#allocation7], 1

</llo_original>
